<compile_context>
chip_gen: v7x
topology: tpu7x:2x2x1
jax: 0.10.0
libtpu: 0.0.40
codegen_flags: <defaults>
</compile_context>

<pallas_src>
import math
import functools

import jax
import jax.numpy as jnp
from jax.experimental import pallas as pl
from jax.experimental.pallas import tpu as pltpu

# ----- module hyper-parameters (deterministic, from __init__ defaults) -----
LB = -1.0
HB = 1.0
DELTA = 0.005
S_PARAM = 2.0

_RANGE = HB - LB
_INV_RANGE = 1.0 / _RANGE
# sv = |1/(u+delta) + 1/(1+delta-u)| * s/2
#    = (1 + 2*delta) * (s/2) / ((u + delta) * (1 + delta - u))   for u in (0,1)
# => log(sv) = _LOG_SV_CONST - log(u + delta) - log(1 + delta - u)
_LOG_SV_CONST = math.log((1.0 + 2.0 * DELTA) * S_PARAM * 0.5)


# -----------------------------------------------------------------------------
# reverse=True path:  prior -> data   (logistic reverse, then affine reverse)
#   x1 = ((1 + 2*delta) * sigmoid(2x/s) - delta) * (hb - lb) + lb
# (identical to (e*(1+delta)-delta)/(1+e) with e = exp(2x/s), but a single
#  tanh instead of exp + divide, and robust for |x| large.)
# -----------------------------------------------------------------------------
def _reverse_kernel(x_ref, x_out_ref):
    x = x_ref[...].astype(jnp.float32)          # keep math in f32 (v5e: no bf16 VPU/EUP)
    sig = 0.5 * (1.0 + jnp.tanh(x * (1.0 / S_PARAM)))
    x1 = ((1.0 + 2.0 * DELTA) * sig - DELTA) * _RANGE + LB
    x_out_ref[...] = x1.astype(x_out_ref.dtype)


# -----------------------------------------------------------------------------
# reverse=False path:  data -> prior  (affine forward, then logistic forward)
#   u  = x/(hb-lb) - lb/(hb-lb)                     in (0, 1)
#   x1 = (log(u+delta) - log(1+delta-u)) * s/2
#   sldj += -D*log(hb-lb) + sum_j log(sv_j)
#         = D*(log_sv_const - log(hb-lb)) - sum_j (log(u+delta)+log(1+delta-u))
#   pdj  *= exp(sldj_delta)          (one EUP exp per row, no extra logs/recips)
# -----------------------------------------------------------------------------
def _forward_kernel(x_ref, pdj_ref, sldj_ref,
                    x_out_ref, pdj_out_ref, sldj_out_ref, *, input_dim):
    x = x_ref[...].astype(jnp.float32)
    pdj = pdj_ref[...].astype(jnp.float32)
    sldj = sldj_ref[...].astype(jnp.float32)

    # affine linear, forward direction
    u = x * _INV_RANGE - LB * _INV_RANGE

    # logistic, forward direction: only 2 transcendentals per element
    la = jnp.log(u + DELTA)
    lb_ = jnp.log(1.0 + DELTA - u)
    x1 = (la - lb_) * (S_PARAM * 0.5)

    # per-row log-det-jacobian delta (affine + logistic fused)
    sum_l = jnp.sum(la + lb_, axis=-1, keepdims=True)
    sldj_delta = input_dim * (_LOG_SV_CONST - math.log(_RANGE)) - sum_l

    sldj_out = sldj + sldj_delta
    pdj_out = pdj * jnp.exp(sldj_delta)          # one exp per row

    x_out_ref[...] = x1.astype(x_out_ref.dtype)
    pdj_out_ref[...] = pdj_out.astype(pdj_out_ref.dtype)
    sldj_out_ref[...] = sldj_out.astype(sldj_out_ref.dtype)


# -----------------------------------------------------------------------------
# wrapper: batch-tiled, pipelined, megacore-parallel
# -----------------------------------------------------------------------------
def _pick_batch_tile(B, D, itemsize):
    """Largest batch tile (multiple of 8, <=2048 rows) whose double-buffered
    x-in/x-out tiles stay within ~16 MiB of VMEM (safe on v7x's 64 MiB TC,
    comfortably under the 32 MiB scoped default on v6e/v7x)."""
    budget = 16 * 1024 * 1024
    per_row = 2 * 2 * D * max(int(itemsize), 4)   # in+out, double-buffered, f32 math
    tb = budget // max(per_row, 1)
    tb = max(8, min(2048, (tb // 8) * 8))
    return B if tb >= B else tb


@functools.partial(jax.jit, static_argnames=("reverse",))
def bounded_support_mapping(x, pdj=None, sldj=None, reverse=True):
    """Pallas-TPU implementation of BoundedSupportMapping.forward."""
    B, D = x.shape
    tb = _pick_batch_tile(B, D, jnp.dtype(x.dtype).itemsize)
    grid = (pl.cdiv(B, tb),)
    params = pltpu.CompilerParams(dimension_semantics=("parallel",))
    # TODO(synk): for production-tiny shapes (D << 128 lanes, B small) a plain
    # XLA fusion is as fast; this kernel targets the tiled large-batch case.

    if reverse:
        x_out = pl.pallas_call(
            _reverse_kernel,
            out_shape=jax.ShapeDtypeStruct((B, D), x.dtype),
            grid=grid,
            in_specs=[pl.BlockSpec((tb, D), lambda i: (i, 0))],
            out_specs=pl.BlockSpec((tb, D), lambda i: (i, 0)),
            compiler_params=params,
        )(x)
        return x_out, pdj, sldj

    assert pdj is not None and sldj is not None, "forward direction needs pdj/sldj"
    x_out, pdj_out, sldj_out = pl.pallas_call(
        functools.partial(_forward_kernel, input_dim=D),
        out_shape=(
            jax.ShapeDtypeStruct((B, D), x.dtype),
            jax.ShapeDtypeStruct((B, 1), pdj.dtype),
            jax.ShapeDtypeStruct((B, 1), sldj.dtype),
        ),
        grid=grid,
        in_specs=[
            pl.BlockSpec((tb, D), lambda i: (i, 0)),
            pl.BlockSpec((tb, 1), lambda i: (i, 0)),
            pl.BlockSpec((tb, 1), lambda i: (i, 0)),
        ],
        out_specs=(
            pl.BlockSpec((tb, D), lambda i: (i, 0)),
            pl.BlockSpec((tb, 1), lambda i: (i, 0)),
            pl.BlockSpec((tb, 1), lambda i: (i, 0)),
        ),
        input_output_aliases={1: 1, 2: 2},   # reuse tiny pdj/sldj buffers in place
        compiler_params=params,
    )(x, pdj, sldj)
    return x_out, pdj_out, sldj_out


# -----------------------------------------------------------------------------
# pure-JAX reference (mirrors the PyTorch module exactly) for sanity checking
# -----------------------------------------------------------------------------
def _ref(x, pdj=None, sldj=None, reverse=True):
    if reverse:
        e = jnp.exp(x * 2.0 / S_PARAM)
        x1 = (e * (1.0 + DELTA) - DELTA) / (1.0 + e)
        x1 = x1 + LB / (HB - LB)
        x1 = x1 * (HB - LB)
        return x1, pdj, sldj
    D = x.shape[-1]
    x = x / (HB - LB) - LB / (HB - LB)
    pdj = pdj * 1.0 / (HB - LB) ** D
    sldj = sldj + (-math.log(HB - LB) * D)
    x1 = (jnp.log(x + DELTA) - jnp.log(1.0 + DELTA - x)) * S_PARAM / 2.0
    sv = jnp.abs(1.0 / (x + DELTA) + 1.0 / (1.0 - x + DELTA)) * S_PARAM / 2.0
    pdj = pdj * jnp.prod(sv, axis=-1, keepdims=True)
    sldj = sldj + jnp.sum(jnp.log(sv), axis=-1, keepdims=True)
    return x1, pdj, sldj


if __name__ == "__main__":
    key = jax.random.PRNGKey(0)
    k1, k2 = jax.random.split(key)

    B, D = 8, 16  # batch, input_dim

    # --- reverse=True (prior -> data): unbounded real inputs ---
    x_rev = jax.random.normal(k1, (B, D), dtype=jnp.float32)
    xr, pr, sr = bounded_support_mapping(x_rev, None, None, reverse=True)
    jax.block_until_ready(xr)
    xr_ref, _, _ = _ref(x_rev, reverse=True)
    assert jnp.allclose(xr, xr_ref, atol=1e-5, rtol=1e-5)

    # --- reverse=False (data -> prior): inputs strictly inside (lb, hb) ---
    x_fwd = jax.random.uniform(k2, (B, D), dtype=jnp.float32,
                               minval=-0.95, maxval=0.95)
    pdj0 = jnp.ones((B, 1), dtype=jnp.float32)
    sldj0 = jnp.zeros((B, 1), dtype=jnp.float32)
    xf, pf, sf = bounded_support_mapping(x_fwd, pdj0, sldj0, reverse=False)
    jax.block_until_ready((xf, pf, sf))
    xf_r, pf_r, sf_r = _ref(x_fwd, pdj0, sldj0, reverse=False)
    assert jnp.allclose(xf, xf_r, atol=1e-4, rtol=1e-4)
    assert jnp.allclose(pf, pf_r, rtol=1e-3)
    assert jnp.allclose(sf, sf_r, atol=1e-4, rtol=1e-4)

    print("KERNEL_OK")
</pallas_src>

<mosaic_0001>
module attributes {stable_mosaic.version = 11 : i64} {
  func.func @_reverse_kernel(%arg0: i32, %arg1: memref<8x16xf32, #tpu.memory_space<vmem>>, %arg2: memref<8x16xf32, #tpu.memory_space<vmem>>) attributes {dimension_semantics = [#tpu.dimension_semantics<parallel>], iteration_bounds = array<i64: 1>, scalar_prefetch = 0 : i64, scratch_operands = 0 : i64, tpu.core_type = #tpu.core_type<tc>, window_params = [{transform_indices = @transform_0, window_bounds = array<i64: 8, 16>}, {transform_indices = @transform_1, window_bounds = array<i64: 8, 16>}]} {
    %c0 = arith.constant 0 : index
    %c0_0 = arith.constant 0 : index
    %0 = vector.load %arg1[%c0, %c0_0] : memref<8x16xf32, #tpu.memory_space<vmem>>, vector<8x16xf32>
    %cst = arith.constant 5.000000e-01 : f32
    %1 = vector.broadcast %cst : f32 to vector<8x16xf32>
    %2 = arith.mulf %0, %1 : vector<8x16xf32>
    %3 = math.tanh %2 : vector<8x16xf32>
    %cst_1 = arith.constant 1.000000e+00 : f32
    %4 = vector.broadcast %cst_1 : f32 to vector<8x16xf32>
    %5 = arith.addf %4, %3 : vector<8x16xf32>
    %cst_2 = arith.constant 5.000000e-01 : f32
    %6 = vector.broadcast %cst_2 : f32 to vector<8x16xf32>
    %7 = arith.mulf %6, %5 : vector<8x16xf32>
    %cst_3 = arith.constant 1.010000e+00 : f32
    %8 = vector.broadcast %cst_3 : f32 to vector<8x16xf32>
    %9 = arith.mulf %8, %7 : vector<8x16xf32>
    %cst_4 = arith.constant 5.000000e-03 : f32
    %10 = vector.broadcast %cst_4 : f32 to vector<8x16xf32>
    %11 = arith.subf %9, %10 : vector<8x16xf32>
    %cst_5 = arith.constant 2.000000e+00 : f32
    %12 = vector.broadcast %cst_5 : f32 to vector<8x16xf32>
    %13 = arith.mulf %11, %12 : vector<8x16xf32>
    %cst_6 = arith.constant -1.000000e+00 : f32
    %14 = vector.broadcast %cst_6 : f32 to vector<8x16xf32>
    %15 = arith.addf %13, %14 : vector<8x16xf32>
    %c0_7 = arith.constant 0 : index
    %c0_8 = arith.constant 0 : index
    %16 = vector.load %arg2[%c0_7, %c0_8] : memref<8x16xf32, #tpu.memory_space<vmem>>, vector<8x16xf32>
    tpu.vector_store %arg2[%c0_7, %c0_8], %15 {strides = array<i32>} : memref<8x16xf32, #tpu.memory_space<vmem>>, vector<8x16xf32>,
    return
  }
  func.func @transform_0(%arg0: i32) -> (i32, i32) {
    %c0_i32 = arith.constant 0 : i32
    %c0_i32_0 = arith.constant 0 : i32
    return %arg0, %c0_i32 : i32, i32
  }
  func.func @transform_1(%arg0: i32) -> (i32, i32) {
    %c0_i32 = arith.constant 0 : i32
    %c0_i32_0 = arith.constant 0 : i32
    return %arg0, %c0_i32 : i32, i32
  }
}

</mosaic_0001>

<llo_original>
// kernel: bounded_support_mapping.1
$region0: #{bounded_support_mapping.1}
  #allocation0 [shape = 'u32[]', space=smem, size = 0x4, offset = 0x4, fixed_abs, tag = 'smem constant byte address 0x4 - core index']
  #allocation1 [shape = 'u32[144,128]{1,0:T(1,128)}', space=vmem, size = 0x12000, scoped, tag = 'internal scratch']
  %s0 = inlined_call_operand.hbm [shape: f32[8,16], index: 0, kind: input, shape index: {}]
  %s1 = inlined_call_operand.hbm [shape: f32[8,16], index: 1, kind: output, shape index: {}]
  %s2 = sld [smem:[#allocation0]]
  $region18: #{bounded_support_mapping.1} parent=0
    _
  %s4 = ssub.s32 1, %s2
  %s5 = scalar_select 0, %s4, %s2
  $region1: #{bounded_support_mapping.1} parent=0
    #allocation2 [shape = 'u8[4096]{0}', space=vmem, size = 0x1000, scoped, tag = 'input window, operand 0, single buffered']
    #allocation3 [shape = 's32[1]{0}', space=sflag, size = 0x4, scoped, tag = 'scoped memory for bounded_support_mapping.1']
    #allocation4 [shape = 's32[1]{0}', space=sflag, size = 0x4, scoped, tag = 'scoped memory for bounded_support_mapping.1']
    #allocation5 [shape = 'u8[4096]{0}', space=vmem, size = 0x1000, scoped, tag = 'output window, operand 0, single buffered']
    %6 = vsyncpa [#allocation3], 0
    %7 = vsyncpa [#allocation4], 0
    // Predicated region
    $region2: #{bounded_support_mapping.1} parent=1 // pred_check
      _
    $region3: #{bounded_support_mapping.1} parent=1 // pred_check_branch
      %9 = sbr.rel (0) target = $region5
    $region4: #{bounded_support_mapping.1} parent=1 // pred_region
      %s11 = ssub.s32 128, 128
      %12 = vsyncadd [#allocation3], %s11
      %s14 = sshll.u32 [#allocation2], 4
      %s15 = int_to_ptr.vmem [resolvable:$true] %s14
      %17 = dma.hbm_to_vmem [thread:$0]  %s0, 128, %s15, [#allocation3]
    $region5: #{bounded_support_mapping.1} parent=1 // pred_fallthru
      _
    // Predicated region
    $region6: #{bounded_support_mapping.1} parent=1 // pred_check
      _
    $region7: #{bounded_support_mapping.1} parent=1 // pred_check_branch
      %19 = sbr.rel (0) target = $region9
    $region8: #{bounded_support_mapping.1} parent=1 // pred_region
      %20 = dma.done [#allocation3], 128
    $region9: #{bounded_support_mapping.1} parent=1 // pred_fallthru
      _
    %v21 = vld [vmem:[#allocation2] sm:$0xff]
    %v22 = vmul.f32 %v21, 0.5
    %v23 = vtanh.pop %v22
    %v24 = vadd.f32 %v23, 1.0
    %v25 = vmul.f32 %v24, 0.5
    %v26 = vmul.f32 %v25, 1.01
    %v27 = vsub.f32 %v26, 0.005
    %v28 = vmul.f32 %v27, 2.0
    %v29 = vadd.f32 %v28, -1.0
    %vm30 = vcmask 130048
    %31 = vst.msk [vmem:[#allocation5] sm:$0xff] %vm30, %v29
    // Predicated region
    $region10: #{bounded_support_mapping.1} parent=1 // pred_check
      _
    $region11: #{bounded_support_mapping.1} parent=1 // pred_check_branch
      %33 = sbr.rel (0) target = $region13
    $region12: #{bounded_support_mapping.1} parent=1 // pred_region
      %s35 = ssub.s32 128, 128
      %36 = vsyncadd [#allocation4], %s35
      %s38 = sshll.u32 [#allocation5], 4
      %s39 = int_to_ptr.vmem [resolvable:$true] %s38
      %41 = dma.vmem_to_hbm [thread:$0]  %s39, 128, %s1, [#allocation4]
    $region13: #{bounded_support_mapping.1} parent=1 // pred_fallthru
      _
    // Predicated region
    $region14: #{bounded_support_mapping.1} parent=1 // pred_check
      _
    $region15: #{bounded_support_mapping.1} parent=1 // pred_check_branch
      %43 = sbr.rel (0) target = $region17
    $region16: #{bounded_support_mapping.1} parent=1 // pred_region
      %44 = dma.done [#allocation4], 128
    $region17: #{bounded_support_mapping.1} parent=1 // pred_fallthru
      _
    %45 = vsyncpa [#allocation3], 1
    %46 = vsyncpa [#allocation4], 1

</llo_original>
